<compile_context>
chip_gen: v6e
topology: v6e:2x2x1
jax: 0.10.0
libtpu: 0.0.40
codegen_flags: <defaults>
</compile_context>

<pallas_src>
import numpy as np

import jax
import jax.numpy as jnp
from jax.experimental import pallas as pl
from jax.experimental.pallas import tpu as pltpu


C1 = 32      # conv1 out-channels (8 output cols x 32 = 256 lanes, no padding)
C2 = 64      # conv2 out-channels (4 positions x 64 = 256 lanes)
F1P = 256    # fc1 out-features padded 200 -> 256
F2P = 128    # fc2 logits padded 81 -> 128 (sliced back to 81 in the wrapper)
XO = 8       # conv1 output rows/cols actually needed by the floor 2x2 pool


# ----------------------------------------------------------------------------
# Fused forward kernel: 4 matmuls, everything stays in VMEM / vregs.
# ----------------------------------------------------------------------------
def nine_net_kernel(xa_ref, w1_ref, b1_ref, w2_ref, b2_ref,
                    wf1_ref, bf1_ref, wf2_ref, bf2_ref, o_ref):
    f32 = jnp.float32
    bf16 = jnp.bfloat16
    B = xa_ref.shape[0] // XO

    # ---- conv1 (3x3, padding=1, 1->32ch) + bias + ReLU: ONE dot -----------
    #   lhs rows  = (output row y, batch b) stacked along sublanes (row=y*B+b)
    #   lhs cols  = the 27 taps (3 kernel rows x 9 input columns)
    #   rhs lanes = (x%2)*128 + (x//2)*32 + c, so the pool's column max below
    #               is a single 128-lane-aligned max.
    h1 = jnp.dot(xa_ref[...], w1_ref[...], preferred_element_type=f32)
    h1 = jnp.maximum(h1 + b1_ref[...], 0.0)                      # (8B, 256)

    # ---- 2x2 floor max-pool (9x9 -> 4x4), fused in-register ---------------
    cm = []
    for yy in range(4):
        r0 = h1[(2 * yy) * B:(2 * yy + 1) * B, :]                # row y=2yy
        r1 = h1[(2 * yy + 1) * B:(2 * yy + 2) * B, :]            # row y=2yy+1
        rmax = jnp.maximum(r0, r1)                               # (B, 256)
        # even-x columns live in lanes [0:128), odd-x in [128:256)
        cm.append(jnp.maximum(rmax[:, :128], rmax[:, 128:]))     # lane=xx*32+c
    pooled = jnp.concatenate(cm, axis=-1).astype(bf16)           # (B, 512)

    # ---- conv2 (3x3 valid, 32->64ch) + bias + ReLU: ONE block-banded dot --
    # output lane = pos*64 + co, pos = oy*2 + ox (all 4 positions at once).
    h2 = jnp.dot(pooled, w2_ref[...], preferred_element_type=f32)
    h2 = jnp.maximum(h2 + b2_ref[...], 0.0).astype(bf16)         # (B, 256)

    # dropout(p=0.4) is the identity at inference time.
    # TODO(synk): training-mode stochastic dropout (pltpu.prng_*) not implemented.

    # ---- fc1 + ReLU (PyTorch (C,H,W) flatten order folded into wf1) -------
    r1m = jnp.dot(h2, wf1_ref[...], preferred_element_type=f32)
    r1m = jnp.maximum(r1m + bf1_ref[...], 0.0).astype(bf16)      # (B, 256)

    # ---- fc2: lane-dense 128-wide logits (wrapper slices back to 81) ------
    o_ref[...] = (jnp.dot(r1m, wf2_ref[...], preferred_element_type=f32)
                  + bf2_ref[...])


def _vmem():
    return pl.BlockSpec(memory_space=pltpu.MemorySpace.VMEM)


@jax.jit
def nine_net_forward(x_nchw, prepped):
    B = x_nchw.shape[0]
    # Layout plumbing (tiny, <2 KB): stack the 3 kernel-row-shifted copies of
    # each needed output row along K, giving the (8B, 27) conv1 lhs with
    # row index = y*B + b.  padding=1 at the top edge -> a zero row.
    x2 = x_nchw.reshape(B, 9, 9).astype(jnp.bfloat16)
    zero_row = jnp.zeros((B, 1, 9), jnp.bfloat16)
    slab = jnp.concatenate([
        jnp.concatenate([zero_row, x2[:, 0:7, :]], axis=1),   # input rows y-1
        x2[:, 0:8, :],                                        # input rows y
        x2[:, 1:9, :],                                        # input rows y+1
    ], axis=-1)                                               # (B, 8, 27)
    xa = jnp.transpose(slab, (1, 0, 2)).reshape(XO * B, 27)   # row = y*B + b

    out_pad = pl.pallas_call(
        nine_net_kernel,
        out_shape=jax.ShapeDtypeStruct((B, F2P), jnp.float32),
        in_specs=[_vmem()] * 9,
        out_specs=_vmem(),
        cost_estimate=pl.CostEstimate(flops=1_150_000, transcendentals=0,
                                      bytes_accessed=480_000),
    )(xa, *prepped)
    return out_pad[:, :81]


# ----------------------------------------------------------------------------
# One-time weight repacking (outside jit): PyTorch layouts -> kernel layouts.
# Weights go to bf16 (halves the per-call HBM->VMEM DMA); biases stay f32.
# ----------------------------------------------------------------------------
def prepare_params(params):
    (conv1_w, conv1_b, conv2_w, conv2_b,
     fc1_w, fc1_b, fc2_w, fc2_b) = [np.asarray(p, np.float32) for p in params]

    def lane1(x):        # conv1/pool lane layout: even x -> [0,128), odd x -> [128,256)
        return (x % 2) * 128 + (x // 2) * C1

    # conv1 as ONE (27, 256) banded matrix; K index = i*9 + q (kernel row i,
    # raw input column q).  padding=1 handled by skipping out-of-range taps.
    w1 = np.zeros((27, XO * C1), np.float32)
    for i in range(3):
        for q in range(9):
            for x in range(XO):
                j = q - x + 1
                if 0 <= j <= 2:
                    w1[i * 9 + q, lane1(x):lane1(x) + C1] = conv1_w[:, 0, i, j]
    b1 = np.zeros((1, XO * C1), np.float32)
    for x in range(XO):
        b1[0, lane1(x):lane1(x) + C1] = conv1_b

    # conv2 as ONE block-banded (512, 256): input lane = yy*128 + xx*32 + ci,
    # output lane = (oy*2+ox)*64 + co; zeros outside each 3x3 window.
    w2 = np.zeros((16 * C1, 4 * C2), np.float32)
    for oy in range(2):
        for ox in range(2):
            pos = oy * 2 + ox
            for dy in range(3):
                for dx in range(3):
                    yy, xx = oy + dy, ox + dx
                    r0 = yy * 128 + xx * C1
                    w2[r0:r0 + C1, pos * C2:(pos + 1) * C2] = \
                        conv2_w[:, :, dy, dx].T
    b2 = np.zeros((1, 4 * C2), np.float32)
    for pos in range(4):
        b2[0, pos * C2:(pos + 1) * C2] = conv2_b

    # fc1: fold PyTorch's flatten(1) order (index = co*4 + pos) into the
    # weight, matching the conv2 output layout pos*64 + co; pad 200 -> 256.
    wf1 = np.zeros((4 * C2, F1P), np.float32)
    for pos in range(4):                                  # pos = oy*2 + ox
        wf1[pos * C2:(pos + 1) * C2, :200] = fc1_w[:, pos::4].T
    bf1 = np.zeros((1, F1P), np.float32)
    bf1[0, :200] = fc1_b

    # fc2: pad 81 -> 128 logits (wrapper slices back).
    wf2 = np.zeros((F1P, F2P), np.float32)
    wf2[:200, :81] = fc2_w.T
    bf2 = np.zeros((1, F2P), np.float32)
    bf2[0, :81] = fc2_b

    return (jnp.asarray(w1, jnp.bfloat16), jnp.asarray(b1, jnp.float32),
            jnp.asarray(w2, jnp.bfloat16), jnp.asarray(b2, jnp.float32),
            jnp.asarray(wf1, jnp.bfloat16), jnp.asarray(bf1, jnp.float32),
            jnp.asarray(wf2, jnp.bfloat16), jnp.asarray(bf2, jnp.float32))


# ----------------------------------------------------------------------------
# Pure-JAX reference (mirrors the PyTorch module) and parameter init.
# ----------------------------------------------------------------------------
def reference_forward(x_nchw, params):
    conv1_w, conv1_b, conv2_w, conv2_b, fc1_w, fc1_b, fc2_w, fc2_b = params
    dn = ("NCHW", "OIHW", "NCHW")
    h = jax.lax.conv_general_dilated(x_nchw, conv1_w, (1, 1), ((1, 1), (1, 1)),
                                     dimension_numbers=dn)
    h = jax.nn.relu(h + conv1_b[None, :, None, None])
    h = jax.lax.reduce_window(h, -jnp.inf, jax.lax.max,
                              (1, 1, 2, 2), (1, 1, 2, 2), "VALID")
    h = jax.lax.conv_general_dilated(h, conv2_w, (1, 1), ((0, 0), (0, 0)),
                                     dimension_numbers=dn)
    h = jax.nn.relu(h + conv2_b[None, :, None, None])
    flat = h.reshape(h.shape[0], -1)                  # (B, 64*2*2), (C,H,W)
    r1 = jax.nn.relu(flat @ fc1_w.T + fc1_b)
    return r1 @ fc2_w.T + fc2_b


def init_params(key):
    ks = jax.random.split(key, 8)
    s = 0.05
    conv1_w = s * jax.random.normal(ks[0], (32, 1, 3, 3), jnp.float32)
    conv1_b = s * jax.random.normal(ks[1], (32,), jnp.float32)
    conv2_w = s * jax.random.normal(ks[2], (64, 32, 3, 3), jnp.float32)
    conv2_b = s * jax.random.normal(ks[3], (64,), jnp.float32)
    fc1_w = s * jax.random.normal(ks[4], (200, 64 * 2 * 2), jnp.float32)
    fc1_b = s * jax.random.normal(ks[5], (200,), jnp.float32)
    fc2_w = s * jax.random.normal(ks[6], (81, 200), jnp.float32)
    fc2_b = s * jax.random.normal(ks[7], (81,), jnp.float32)
    return (conv1_w, conv1_b, conv2_w, conv2_b, fc1_w, fc1_b, fc2_w, fc2_b)


if __name__ == "__main__":
    key = jax.random.PRNGKey(0)
    k_x, k_p = jax.random.split(key)
    # 9x9 Go board, single input plane, small batch.
    x = jax.random.normal(k_x, (2, 1, 9, 9), jnp.float32)
    params = init_params(k_p)
    prepped = prepare_params(params)

    out = nine_net_forward(x, prepped)
    out = jax.block_until_ready(out)
    assert out.shape == (2, 81) and out.dtype == jnp.float32

    ref = jax.block_until_ready(reference_forward(x, params))
    max_err = float(jnp.max(jnp.abs(out - ref)))
    assert max_err < 1e-2, f"mismatch vs reference: max_err={max_err}"

    print("KERNEL_OK")
</pallas_src>

<mosaic_0001>
module attributes {stable_mosaic.version = 11 : i64} {
  func.func @nine_net_kernel(%arg0: memref<16x27xbf16, #tpu.memory_space<vmem>>, %arg1: memref<27x256xbf16, #tpu.memory_space<vmem>>, %arg2: memref<1x256xf32, #tpu.memory_space<vmem>>, %arg3: memref<512x256xbf16, #tpu.memory_space<vmem>>, %arg4: memref<1x256xf32, #tpu.memory_space<vmem>>, %arg5: memref<256x256xbf16, #tpu.memory_space<vmem>>, %arg6: memref<1x256xf32, #tpu.memory_space<vmem>>, %arg7: memref<256x128xbf16, #tpu.memory_space<vmem>>, %arg8: memref<1x128xf32, #tpu.memory_space<vmem>>, %arg9: memref<2x128xf32, #tpu.memory_space<vmem>>) attributes {dimension_semantics = [], scalar_prefetch = 0 : i64, scratch_operands = 0 : i64, tpu.core_type = #tpu.core_type<tc>} {
    %c0 = arith.constant 0 : index
    %c0_0 = arith.constant 0 : index
    %0 = vector.load %arg0[%c0, %c0_0] : memref<16x27xbf16, #tpu.memory_space<vmem>>, vector<16x27xbf16>
    %c0_1 = arith.constant 0 : index
    %c0_2 = arith.constant 0 : index
    %1 = vector.load %arg1[%c0_1, %c0_2] : memref<27x256xbf16, #tpu.memory_space<vmem>>, vector<27x256xbf16>
    %cst = arith.constant dense<0.000000e+00> : vector<16x256xf32>
    %2 = tpu.matmul %0, %1, %cst {dimension_numbers = #tpu.dot_dimension_numbers<[1], [0], [0], [1], [0, 0, 1, 1], [], []>} : vector<16x27xbf16>, vector<27x256xbf16>, vector<16x256xf32> -> vector<16x256xf32>
    %c0_3 = arith.constant 0 : index
    %c0_4 = arith.constant 0 : index
    %3 = vector.load %arg2[%c0_3, %c0_4] : memref<1x256xf32, #tpu.memory_space<vmem>>, vector<1x256xf32>
    %4 = vector.broadcast %3 : vector<1x256xf32> to vector<16x256xf32>
    %5 = arith.addf %2, %4 : vector<16x256xf32>
    %cst_5 = arith.constant 0.000000e+00 : f32
    %6 = vector.broadcast %cst_5 : f32 to vector<16x256xf32>
    %7 = arith.maximumf %5, %6 : vector<16x256xf32>
    %8 = vector.extract_strided_slice %7 {offsets = [0, 0], sizes = [2, 256], strides = [1, 1]} : vector<16x256xf32> to vector<2x256xf32>
    %9 = vector.extract_strided_slice %7 {offsets = [2, 0], sizes = [2, 256], strides = [1, 1]} : vector<16x256xf32> to vector<2x256xf32>
    %10 = arith.maximumf %8, %9 : vector<2x256xf32>
    %11 = vector.extract_strided_slice %10 {offsets = [0, 0], sizes = [2, 128], strides = [1, 1]} : vector<2x256xf32> to vector<2x128xf32>
    %12 = vector.extract_strided_slice %10 {offsets = [0, 128], sizes = [2, 128], strides = [1, 1]} : vector<2x256xf32> to vector<2x128xf32>
    %13 = arith.maximumf %11, %12 : vector<2x128xf32>
    %14 = vector.extract_strided_slice %7 {offsets = [4, 0], sizes = [2, 256], strides = [1, 1]} : vector<16x256xf32> to vector<2x256xf32>
    %15 = vector.extract_strided_slice %7 {offsets = [6, 0], sizes = [2, 256], strides = [1, 1]} : vector<16x256xf32> to vector<2x256xf32>
    %16 = arith.maximumf %14, %15 : vector<2x256xf32>
    %17 = vector.extract_strided_slice %16 {offsets = [0, 0], sizes = [2, 128], strides = [1, 1]} : vector<2x256xf32> to vector<2x128xf32>
    %18 = vector.extract_strided_slice %16 {offsets = [0, 128], sizes = [2, 128], strides = [1, 1]} : vector<2x256xf32> to vector<2x128xf32>
    %19 = arith.maximumf %17, %18 : vector<2x128xf32>
    %20 = vector.extract_strided_slice %7 {offsets = [8, 0], sizes = [2, 256], strides = [1, 1]} : vector<16x256xf32> to vector<2x256xf32>
    %21 = vector.extract_strided_slice %7 {offsets = [10, 0], sizes = [2, 256], strides = [1, 1]} : vector<16x256xf32> to vector<2x256xf32>
    %22 = arith.maximumf %20, %21 : vector<2x256xf32>
    %23 = vector.extract_strided_slice %22 {offsets = [0, 0], sizes = [2, 128], strides = [1, 1]} : vector<2x256xf32> to vector<2x128xf32>
    %24 = vector.extract_strided_slice %22 {offsets = [0, 128], sizes = [2, 128], strides = [1, 1]} : vector<2x256xf32> to vector<2x128xf32>
    %25 = arith.maximumf %23, %24 : vector<2x128xf32>
    %26 = vector.extract_strided_slice %7 {offsets = [12, 0], sizes = [2, 256], strides = [1, 1]} : vector<16x256xf32> to vector<2x256xf32>
    %27 = vector.extract_strided_slice %7 {offsets = [14, 0], sizes = [2, 256], strides = [1, 1]} : vector<16x256xf32> to vector<2x256xf32>
    %28 = arith.maximumf %26, %27 : vector<2x256xf32>
    %29 = vector.extract_strided_slice %28 {offsets = [0, 0], sizes = [2, 128], strides = [1, 1]} : vector<2x256xf32> to vector<2x128xf32>
    %30 = vector.extract_strided_slice %28 {offsets = [0, 128], sizes = [2, 128], strides = [1, 1]} : vector<2x256xf32> to vector<2x128xf32>
    %31 = arith.maximumf %29, %30 : vector<2x128xf32>
    %32 = tpu.concatenate %13, %19, %25, %31 in 1 : vector<2x128xf32>, vector<2x128xf32>, vector<2x128xf32>, vector<2x128xf32> -> vector<2x512xf32>
    %33 = arith.truncf %32 : vector<2x512xf32> to vector<2x512xbf16>
    %c0_6 = arith.constant 0 : index
    %c0_7 = arith.constant 0 : index
    %34 = vector.load %arg3[%c0_6, %c0_7] : memref<512x256xbf16, #tpu.memory_space<vmem>>, vector<512x256xbf16>
    %cst_8 = arith.constant dense<0.000000e+00> : vector<2x256xf32>
    %35 = tpu.matmul %33, %34, %cst_8 {dimension_numbers = #tpu.dot_dimension_numbers<[1], [0], [0], [1], [0, 0, 1, 1], [], []>} : vector<2x512xbf16>, vector<512x256xbf16>, vector<2x256xf32> -> vector<2x256xf32>
    %c0_9 = arith.constant 0 : index
    %c0_10 = arith.constant 0 : index
    %36 = vector.load %arg4[%c0_9, %c0_10] : memref<1x256xf32, #tpu.memory_space<vmem>>, vector<1x256xf32>
    %37 = vector.broadcast %36 : vector<1x256xf32> to vector<2x256xf32>
    %38 = arith.addf %35, %37 : vector<2x256xf32>
    %cst_11 = arith.constant 0.000000e+00 : f32
    %39 = vector.broadcast %cst_11 : f32 to vector<2x256xf32>
    %40 = arith.maximumf %38, %39 : vector<2x256xf32>
    %41 = arith.truncf %40 : vector<2x256xf32> to vector<2x256xbf16>
    %c0_12 = arith.constant 0 : index
    %c0_13 = arith.constant 0 : index
    %42 = vector.load %arg5[%c0_12, %c0_13] : memref<256x256xbf16, #tpu.memory_space<vmem>>, vector<256x256xbf16>
    %cst_14 = arith.constant dense<0.000000e+00> : vector<2x256xf32>
    %43 = tpu.matmul %41, %42, %cst_14 {dimension_numbers = #tpu.dot_dimension_numbers<[1], [0], [0], [1], [0, 0, 1, 1], [], []>} : vector<2x256xbf16>, vector<256x256xbf16>, vector<2x256xf32> -> vector<2x256xf32>
    %c0_15 = arith.constant 0 : index
    %c0_16 = arith.constant 0 : index
    %44 = vector.load %arg6[%c0_15, %c0_16] : memref<1x256xf32, #tpu.memory_space<vmem>>, vector<1x256xf32>
    %45 = vector.broadcast %44 : vector<1x256xf32> to vector<2x256xf32>
    %46 = arith.addf %43, %45 : vector<2x256xf32>
    %cst_17 = arith.constant 0.000000e+00 : f32
    %47 = vector.broadcast %cst_17 : f32 to vector<2x256xf32>
    %48 = arith.maximumf %46, %47 : vector<2x256xf32>
    %49 = arith.truncf %48 : vector<2x256xf32> to vector<2x256xbf16>
    %c0_18 = arith.constant 0 : index
    %c0_19 = arith.constant 0 : index
    %50 = vector.load %arg7[%c0_18, %c0_19] : memref<256x128xbf16, #tpu.memory_space<vmem>>, vector<256x128xbf16>
    %cst_20 = arith.constant dense<0.000000e+00> : vector<2x128xf32>
    %51 = tpu.matmul %49, %50, %cst_20 {dimension_numbers = #tpu.dot_dimension_numbers<[1], [0], [0], [1], [0, 0, 1, 1], [], []>} : vector<2x256xbf16>, vector<256x128xbf16>, vector<2x128xf32> -> vector<2x128xf32>
    %c0_21 = arith.constant 0 : index
    %c0_22 = arith.constant 0 : index
    %52 = vector.load %arg8[%c0_21, %c0_22] : memref<1x128xf32, #tpu.memory_space<vmem>>, vector<1x128xf32>
    %53 = vector.broadcast %52 : vector<1x128xf32> to vector<2x128xf32>
    %54 = arith.addf %51, %53 : vector<2x128xf32>
    %c0_23 = arith.constant 0 : index
    %c0_24 = arith.constant 0 : index
    %55 = vector.load %arg9[%c0_23, %c0_24] : memref<2x128xf32, #tpu.memory_space<vmem>>, vector<2x128xf32>
    tpu.vector_store %arg9[%c0_23, %c0_24], %54 {strides = array<i32>} : memref<2x128xf32, #tpu.memory_space<vmem>>, vector<2x128xf32>,
    return
  }
}

</mosaic_0001>

<llo_original>
// kernel: nine_net_forward.1
$region0: #{nine_net_forward.1}
  #allocation0 [shape = 'u32[]', space=smem, size = 0x4, offset = 0x4, fixed_abs, tag = 'smem constant byte address 0x4 - core index']
  #allocation1 [shape = 'u32[144,128]{1,0:T(1,128)}', space=vmem, size = 0x12000, scoped, tag = 'internal scratch']
  %s0 = inlined_call_operand.vmem [shape: bf16[16,27], index: 0, kind: input, shape index: {}]
  %s1 = inlined_call_operand.hbm [shape: bf16[27,256], index: 1, kind: input, shape index: {}]
  %s2 = inlined_call_operand.vmem [shape: f32[1,256], index: 2, kind: input, shape index: {}]
  %s3 = inlined_call_operand.hbm [shape: bf16[512,256], index: 3, kind: input, shape index: {}]
  %s4 = inlined_call_operand.vmem [shape: f32[1,256], index: 4, kind: input, shape index: {}]
  %s5 = inlined_call_operand.hbm [shape: bf16[256,256], index: 5, kind: input, shape index: {}]
  %s6 = inlined_call_operand.vmem [shape: f32[1,256], index: 6, kind: input, shape index: {}]
  %s7 = inlined_call_operand.vmem [shape: bf16[256,128], index: 7, kind: input, shape index: {}]
  %s8 = inlined_call_operand.vmem [shape: f32[1,128], index: 8, kind: input, shape index: {}]
  %s9 = inlined_call_operand.hbm [shape: f32[2,128], index: 9, kind: output, shape index: {}]
  %s10 = sld [smem:[#allocation0]]
  $region58: #{nine_net_forward.1} parent=0
    _
  %s12 = ssub.s32 1, %s10
  %s13 = scalar_select 0, %s12, %s10
  $region1: #{nine_net_forward.1} parent=0
    #allocation2 [shape = 'u8[16384]{0}', space=vmem, size = 0x4000, scoped, tag = 'input window, operand 1, single buffered']
    #allocation3 [shape = 's32[1]{0}', space=sflag, size = 0x4, scoped, tag = 'scoped memory for nine_net_forward.1']
    #allocation4 [shape = 's32[1]{0}', space=sflag, size = 0x4, scoped, tag = 'scoped memory for nine_net_forward.1']
    #allocation5 [shape = 'u8[262144]{0}', space=vmem, size = 0x40000, scoped, tag = 'input window, operand 3, single buffered']
    #allocation6 [shape = 's32[1]{0}', space=sflag, size = 0x4, scoped, tag = 'scoped memory for nine_net_forward.1']
    #allocation7 [shape = 'u8[131072]{0}', space=vmem, size = 0x20000, scoped, tag = 'input window, operand 5, single buffered']
    #allocation8 [shape = 'u8[1024]{0}', space=vmem, size = 0x400, scoped, tag = 'output window, operand 0, single buffered']
    %14 = vsyncpa [#allocation3], 0
    %15 = vsyncpa [#allocation6], 0
    %16 = vsyncpa [#allocation4], 0
    // Predicated region
    $region2: #{nine_net_forward.1} parent=1 // pred_check
      _
    $region3: #{nine_net_forward.1} parent=1 // pred_check_branch
      %18 = sbr.rel (0) target = $region5
    $region4: #{nine_net_forward.1} parent=1 // pred_region
      _
    $region5: #{nine_net_forward.1} parent=1 // pred_fallthru
      _
    // Predicated region
    $region6: #{nine_net_forward.1} parent=1 // pred_check
      _
    $region7: #{nine_net_forward.1} parent=1 // pred_check_branch
      %20 = sbr.rel (0) target = $region9
    $region8: #{nine_net_forward.1} parent=1 // pred_region
      %s22 = ssub.s32 512, 512
      %23 = vsyncadd [#allocation3], %s22
      %s24 = sshll.u32 [#allocation2], 4
      %s25 = int_to_ptr.vmem [resolvable:$true] %s24
      %30 = dma.hbm_to_vmem [thread:$0]  %s1, 512, %s25, [#allocation3], 128, 128, 8
    $region9: #{nine_net_forward.1} parent=1 // pred_fallthru
      _
    // Predicated region
    $region10: #{nine_net_forward.1} parent=1 // pred_check
      _
    $region11: #{nine_net_forward.1} parent=1 // pred_check_branch
      %32 = sbr.rel (0) target = $region13
    $region12: #{nine_net_forward.1} parent=1 // pred_region
      _
    $region13: #{nine_net_forward.1} parent=1 // pred_fallthru
      _
    // Predicated region
    $region14: #{nine_net_forward.1} parent=1 // pred_check
      _
    $region15: #{nine_net_forward.1} parent=1 // pred_check_branch
      %34 = sbr.rel (0) target = $region17
    $region16: #{nine_net_forward.1} parent=1 // pred_region
      %s36 = ssub.s32 8192, 8192
      %37 = vsyncadd [#allocation6], %s36
      %s38 = sshll.u32 [#allocation5], 4
      %s39 = int_to_ptr.vmem [resolvable:$true] %s38
      %44 = dma.hbm_to_vmem [thread:$0]  %s3, 8192, %s39, [#allocation6], 128, 128, 8
    $region17: #{nine_net_forward.1} parent=1 // pred_fallthru
      _
    // Predicated region
    $region18: #{nine_net_forward.1} parent=1 // pred_check
      _
    $region19: #{nine_net_forward.1} parent=1 // pred_check_branch
      %46 = sbr.rel (0) target = $region21
    $region20: #{nine_net_forward.1} parent=1 // pred_region
      _
    $region21: #{nine_net_forward.1} parent=1 // pred_fallthru
      _
    // Predicated region
    $region22: #{nine_net_forward.1} parent=1 // pred_check
      _
    $region23: #{nine_net_forward.1} parent=1 // pred_check_branch
      %48 = sbr.rel (0) target = $region25
    $region24: #{nine_net_forward.1} parent=1 // pred_region
      %s50 = ssub.s32 4096, 4096
      %51 = vsyncadd [#allocation6], %s50
      %s52 = sshll.u32 [#allocation7], 4
      %s53 = int_to_ptr.vmem [resolvable:$true] %s52
      %58 = dma.hbm_to_vmem [thread:$0]  %s5, 4096, %s53, [#allocation6], 128, 128, 8
    $region25: #{nine_net_forward.1} parent=1 // pred_fallthru
      _
    // Predicated region
    $region26: #{nine_net_forward.1} parent=1 // pred_check
      _
    $region27: #{nine_net_forward.1} parent=1 // pred_check_branch
      %60 = sbr.rel (0) target = $region29
    $region28: #{nine_net_forward.1} parent=1 // pred_region
      _
    $region29: #{nine_net_forward.1} parent=1 // pred_fallthru
      _
    // Predicated region
    $region30: #{nine_net_forward.1} parent=1 // pred_check
      _
    $region31: #{nine_net_forward.1} parent=1 // pred_check_branch
      %62 = sbr.rel (0) target = $region33
    $region32: #{nine_net_forward.1} parent=1 // pred_region
      _
    $region33: #{nine_net_forward.1} parent=1 // pred_fallthru
      _
    // Predicated region
    $region34: #{nine_net_forward.1} parent=1 // pred_check
      _
    $region35: #{nine_net_forward.1} parent=1 // pred_check_branch
      %64 = sbr.rel (0) target = $region37
    $region36: #{nine_net_forward.1} parent=1 // pred_region
      _
    $region37: #{nine_net_forward.1} parent=1 // pred_fallthru
      _
    // Predicated region
    $region38: #{nine_net_forward.1} parent=1 // pred_check
      _
    $region39: #{nine_net_forward.1} parent=1 // pred_check_branch
      %66 = sbr.rel (0) target = $region41
    $region40: #{nine_net_forward.1} parent=1 // pred_region
      %67 = dma.done [#allocation3], 512
    $region41: #{nine_net_forward.1} parent=1 // pred_fallthru
      _
    // Predicated region
    $region42: #{nine_net_forward.1} parent=1 // pred_check
      _
    $region43: #{nine_net_forward.1} parent=1 // pred_check_branch
      %69 = sbr.rel (0) target = $region45
    $region44: #{nine_net_forward.1} parent=1 // pred_region
      %70 = dma.done [#allocation6], 8192
    $region45: #{nine_net_forward.1} parent=1 // pred_fallthru
      _
    // Predicated region
    $region46: #{nine_net_forward.1} parent=1 // pred_check
      _
    $region47: #{nine_net_forward.1} parent=1 // pred_check_branch
      %72 = sbr.rel (0) target = $region49
    $region48: #{nine_net_forward.1} parent=1 // pred_region
      %73 = dma.done [#allocation6], 4096
    $region49: #{nine_net_forward.1} parent=1 // pred_fallthru
      _
    %v75 = vld [vmem:[%s0] sm:$0xf]
    %v76 = vld [vmem:[%s0 + $0x4] sm:$0xf]
    %v77 = vld [vmem:[#allocation2] sm:$0xff]
    %v78 = vld [vmem:[#allocation2 + $0x8] sm:$0xff]
    %v79 = vld [vmem:[#allocation2 + $0x10] sm:$0xff]
    %v80 = vld [vmem:[#allocation2 + $0x18] sm:$0x33]
    %v81 = vld [vmem:[%s2] sm:$0x3]
    %v83 = vlaneseq
    %v84 = vshrl.u32 %v83, 7
    %v85 = vsub.s32 0, %v84
    %v86 = vrot.slane %v81, %v85
    %v87 = vlaneseq
    %v88 = vshrl.u32 %v87, 7
    %v89 = vsub.s32 1, %v88
    %v90 = vrot.slane %v81, %v89
    %v95 = vunpack.c.l.b16 %v75
    %v96 = vunpack.c.l.b16 %v76
    %v97 = vpack.c.b16 %v96, %v95
    %v102 = vunpack.c.l.b16 %v77
    %v103 = vunpack.c.h.b16 %v77
    %v104 = vunpack.c.l.b16 %v78
    %v105 = vunpack.c.h.b16 %v78
    %v106 = vunpack.c.l.b16 %v79
    %v107 = vunpack.c.h.b16 %v79
    %v108 = vunpack.c.l.b16 %v80
    %v109 = vunpack.c.h.b16 %v80
    %v110 = vpack.c.b16 %v104, %v102
    %v111 = vpack.c.b16 %v105, %v103
    %v112 = vpack.c.b16 %v108, %v106
    %v113 = vpack.c.b16 %v109, %v107
    %vm116 = vcmask 220160
    %v118 = vsel %vm116, %v97, 0
    %vm120 = vcmask 1044480
    %vm121 = vcmask 1045504
    %v122 = vsel %vm120, 4294967295, 65535
    %v123 = vsel %vm121, %v122, 0
    %v125 = vand.u32 %v112, %v123
    %v128 = vand.u32 %v113, %v123
    %130 = vmatprep.subr.bf16.mxu0 0
    %131 = vmatpush1.bf16.msra.mxu0 0
    %132 = vmatprep.subr.bf16.mxu0 0
    %133 = vmatpush1.bf16.msra.mxu0 0
    %134 = vmatprep.subr.bf16.mxu0 0
    %135 = vmatpush1.bf16.msra.mxu0 0
    %136 = vmatprep.subr.bf16.mxu0 0
    %137 = vmatpush1.bf16.msra.mxu0 0
    %138 = vmatprep.subr.bf16.mxu0 0
    %139 = vmatpush1.bf16.msra.mxu0 0
    %140 = vmatprep.subr.bf16.mxu0 0
    %141 = vmatpush1.bf16.msra.mxu0 0
    %142 = vmatprep.subr.bf16.mxu0 %v128
    %143 = vmatpush1.bf16.msra.mxu0 %v125
    %144 = vmatprep.subr.bf16.mxu0 %v111
    %145 = vmatpush1.bf16.msra.mxu0 %v110
    %146 = vmatprep.subr.bf16.mxu0 0
    %147 = vmatpush2.bf16.msra.mxu0 0
    %148 = vmatprep.subr.bf16.mxu0 0
    %149 = vmatpush2.bf16.msra.mxu0 0
    %150 = vmatprep.subr.bf16.mxu0 0
    %151 = vmatpush2.bf16.msra.mxu0 0
    %152 = vmatprep.subr.bf16.mxu0 0
    %153 = vmatpush2.bf16.msra.mxu0 0
    %154 = vmatprep.subr.bf16.mxu0 0
    %155 = vmatpush2.bf16.msra.mxu0 0
    %156 = vmatprep.subr.bf16.mxu0 0
    %157 = vmatpush2.bf16.msra.mxu0 0
    %158 = vmatprep.subr.bf16.mxu0 0
    %159 = vmatpush2.bf16.msra.mxu0 0
    %160 = vmatprep.subr.bf16.mxu0 0
    %161 = vmatpush2.bf16.msra.mxu0 0
    %162 = vmatprep.mubr.bf16.mxu0 0
    %163 = vmatmul.mubr.bf16.gmra.mxu0 %v118
    %v164 = vpop.f32.mrf.mxu0
    %v165 = vadd.f32 %v86, %v164
    %v166 = vpop.f32.mrf.mxu0
    %v167 = vadd.f32 %v90, %v166
    %v168 = vpop.f32.mrf.mxu0
    %v169 = vadd.f32 %v86, %v168
    %v170 = vpop.f32.mrf.mxu0
    %v171 = vadd.f32 %v90, %v170
    %172 = vdwg.mxu0
    %v173 = vmax.f32 %v165, 0.0
    %v174 = vmax.f32 %v167, 0.0
    %v175 = vmax.f32 %v169, 0.0
    %v176 = vmax.f32 %v171, 0.0
    %v179 = vrot.slane %v173, 2
    %v180 = vrot.slane %v174, 2
    %v183 = vmax.f32 %v173, %v179
    %v184 = vmax.f32 %v174, %v180
    %v185 = vmax.f32 %v183, %v184
    %v188 = vrot.slane %v175, 2
    %v189 = vrot.slane %v176, 2
    %v192 = vmax.f32 %v175, %v188
    %v193 = vmax.f32 %v176, %v189
    %v194 = vmax.f32 %v192, %v193
    %v196 = vrot.slane %v185, 4
    %v199 = vrot.slane %v194, 4
    %v201 = vpack.c.bf16 %v185, %v185
    %v202 = vpack.c.bf16 %v196, %v196
    %v203 = vpack.c.bf16 %v194, %v194
    %v204 = vpack.c.bf16 %v199, %v199
    %v205 = vld [vmem:[#allocation5] sm:$0xff]
    %v206 = vld [vmem:[#allocation5 + $0x8] sm:$0xff]
    %v207 = vld [vmem:[#allocation5 + $0x10] sm:$0xff]
    %v208 = vld [vmem:[#allocation5 + $0x18] sm:$0xff]
    %v209 = vld [vmem:[#allocation5 + $0x20] sm:$0xff]
    %v210 = vld [vmem:[#allocation5 + $0x28] sm:$0xff]
    %v211 = vld [vmem:[#allocation5 + $0x30] sm:$0xff]
    %v212 = vld [vmem:[#allocation5 + $0x38] sm:$0xff]
    %v213 = vld [vmem:[#allocation5 + $0x40] sm:$0xff]
    %v214 = vld [vmem:[#allocation5 + $0x48] sm:$0xff]
    %v215 = vld [vmem:[#allocation5 + $0x50] sm:$0xff]
    %v216 = vld [vmem:[#allocation5 + $0x58] sm:$0xff]
    %v217 = vld [vmem:[#allocation5 + $0x60] sm:$0xff]
    %v218 = vld [vmem:[#allocation5 + $0x68] sm:$0xff]
    %v219 = vld [vmem:[#allocation5 + $0x70] sm:$0xff]
    %v220 = vld [vmem:[#allocation5 + $0x78] sm:$0xff]
    %v221 = vld [vmem:[#allocation5 + $0x80] sm:$0xff]
    %v222 = vld [vmem:[#allocation5 + $0x88] sm:$0xff]
    %v223 = vld [vmem:[#allocation5 + $0x90] sm:$0xff]
    %v224 = vld [vmem:[#allocation5 + $0x98] sm:$0xff]
    %v225 = vld [vmem:[#allocation5 + $0xa0] sm:$0xff]
    %v226 = vld [vmem:[#allocation5 + $0xa8] sm:$0xff]
    %v227 = vld [vmem:[#allocation5 + $0xb0] sm:$0xff]
    %v228 = vld [vmem:[#allocation5 + $0xb8] sm:$0xff]
    %v229 = vld [vmem:[#allocation5 + $0xc0] sm:$0xff]
    %v230 = vld [vmem:[#allocation5 + $0xc8] sm:$0xff]
    %v231 = vld [vmem:[#allocation5 + $0xd0] sm:$0xff]
    %v232 = vld [vmem:[#allocation5 + $0xd8] sm:$0xff]
    %v233 = vld [vmem:[#allocation5 + $0xe0] sm:$0xff]
    %v234 = vld [vmem:[#allocation5 + $0xe8] sm:$0xff]
    %v235 = vld [vmem:[#allocation5 + $0xf0] sm:$0xff]
    %v236 = vld [vmem:[#allocation5 + $0xf8] sm:$0xff]
    %v237 = vld [vmem:[#allocation5 + $0x100] sm:$0xff]
    %v238 = vld [vmem:[#allocation5 + $0x108] sm:$0xff]
    %v239 = vld [vmem:[#allocation5 + $0x110] sm:$0xff]
    %v240 = vld [vmem:[#allocation5 + $0x118] sm:$0xff]
    %v241 = vld [vmem:[#allocation5 + $0x120] sm:$0xff]
    %v242 = vld [vmem:[#allocation5 + $0x128] sm:$0xff]
    %v243 = vld [vmem:[#allocation5 + $0x130] sm:$0xff]
    %v244 = vld [vmem:[#allocation5 + $0x138] sm:$0xff]
    %v245 = vld [vmem:[#allocation5 + $0x140] sm:$0xff]
    %v246 = vld [vmem:[#allocation5 + $0x148] sm:$0xff]
    %v247 = vld [vmem:[#allocation5 + $0x150] sm:$0xff]
    %v248 = vld [vmem:[#allocation5 + $0x158] sm:$0xff]
    %v249 = vld [vmem:[#allocation5 + $0x160] sm:$0xff]
    %v250 = vld [vmem:[#allocation5 + $0x168] sm:$0xff]
    %v251 = vld [vmem:[#allocation5 + $0x170] sm:$0xff]
    %v252 = vld [vmem:[#allocation5 + $0x178] sm:$0xff]
    %v253 = vld [vmem:[#allocation5 + $0x180] sm:$0xff]
    %v254 = vld [vmem:[#allocation5 + $0x188] sm:$0xff]
    %v255 = vld [vmem:[#allocation5 + $0x190] sm:$0xff]
    %v256 = vld [vmem:[#allocation5 + $0x198] sm:$0xff]
    %v257 = vld [vmem:[#allocation5 + $0x1a0] sm:$0xff]
    %v258 = vld [vmem:[#allocation5 + $0x1a8] sm:$0xff]
    %v259 = vld [vmem:[#allocation5 + $0x1b0] sm:$0xff]
    %v260 = vld [vmem:[#allocation5 + $0x1b8] sm:$0xff]
    %v261 = vld [vmem:[#allocation5 + $0x1c0] sm:$0xff]
    %v262 = vld [vmem:[#allocation5 + $0x1c8] sm:$0xff]
    %v263 = vld [vmem:[#allocation5 + $0x1d0] sm:$0xff]
    %v264 = vld [vmem:[#allocation5 + $0x1d8] sm:$0xff]
    %v265 = vld [vmem:[#allocation5 + $0x1e0] sm:$0xff]
    %v266 = vld [vmem:[#allocation5 + $0x1e8] sm:$0xff]
    %v267 = vld [vmem:[#allocation5 + $0x1f0] sm:$0xff]
    %v268 = vld [vmem:[#allocation5 + $0x1f8] sm:$0xff]
    %v269 = vld [vmem:[%s4] sm:$0x3]
    %v271 = vlaneseq
    %v272 = vshrl.u32 %v271, 7
    %v273 = vsub.s32 0, %v272
    %v274 = vrot.slane %v269, %v273
    %v275 = vlaneseq
    %v276 = vshrl.u32 %v275, 7
    %v277 = vsub.s32 1, %v276
    %v278 = vrot.slane %v269, %v277
    %v345 = vunpack.c.l.b16 %v205
    %v346 = vunpack.c.h.b16 %v205
    %v347 = vunpack.c.l.b16 %v206
    %v348 = vunpack.c.h.b16 %v206
    %v349 = vunpack.c.l.b16 %v207
    %v350 = vunpack.c.h.b16 %v207
    %v351 = vunpack.c.l.b16 %v208
    %v352 = vunpack.c.h.b16 %v208
    %v353 = vunpack.c.l.b16 %v209
    %v354 = vunpack.c.h.b16 %v209
    %v355 = vunpack.c.l.b16 %v210
    %v356 = vunpack.c.h.b16 %v210
    %v357 = vunpack.c.l.b16 %v211
    %v358 = vunpack.c.h.b16 %v211
    %v359 = vunpack.c.l.b16 %v212
    %v360 = vunpack.c.h.b16 %v212
    %v361 = vunpack.c.l.b16 %v213
    %v362 = vunpack.c.h.b16 %v213
    %v363 = vunpack.c.l.b16 %v214
    %v364 = vunpack.c.h.b16 %v214
    %v365 = vunpack.c.l.b16 %v215
    %v366 = vunpack.c.h.b16 %v215
    %v367 = vunpack.c.l.b16 %v216
    %v368 = vunpack.c.h.b16 %v216
    %v369 = vunpack.c.l.b16 %v217
    %v370 = vunpack.c.h.b16 %v217
    %v371 = vunpack.c.l.b16 %v218
    %v372 = vunpack.c.h.b16 %v218
    %v373 = vunpack.c.l.b16 %v219
    %v374 = vunpack.c.h.b16 %v219
    %v375 = vunpack.c.l.b16 %v220
    %v376 = vunpack.c.h.b16 %v220
    %v377 = vunpack.c.l.b16 %v221
    %v378 = vunpack.c.h.b16 %v221
    %v379 = vunpack.c.l.b16 %v222
    %v380 = vunpack.c.h.b16 %v222
    %v381 = vunpack.c.l.b16 %v223
    %v382 = vunpack.c.h.b16 %v223
    %v383 = vunpack.c.l.b16 %v224
    %v384 = vunpack.c.h.b16 %v224
    %v385 = vunpack.c.l.b16 %v225
    %v386 = vunpack.c.h.b16 %v225
    %v387 = vunpack.c.l.b16 %v226
    %v388 = vunpack.c.h.b16 %v226
    %v389 = vunpack.c.l.b16 %v227
    %v390 = vunpack.c.h.b16 %v227
    %v391 = vunpack.c.l.b16 %v228
    %v392 = vunpack.c.h.b16 %v228
    %v393 = vunpack.c.l.b16 %v229
    %v394 = vunpack.c.h.b16 %v229
    %v395 = vunpack.c.l.b16 %v230
    %v396 = vunpack.c.h.b16 %v230
    %v397 = vunpack.c.l.b16 %v231
    %v398 = vunpack.c.h.b16 %v231
    %v399 = vunpack.c.l.b16 %v232
    %v400 = vunpack.c.h.b16 %v232
    %v401 = vunpack.c.l.b16 %v233
    %v402 = vunpack.c.h.b16 %v233
    %v403 = vunpack.c.l.b16 %v234
    %v404 = vunpack.c.h.b16 %v234
    %v405 = vunpack.c.l.b16 %v235
    %v406 = vunpack.c.h.b16 %v235
    %v407 = vunpack.c.l.b16 %v236
    %v408 = vunpack.c.h.b16 %v236
    %v409 = vunpack.c.l.b16 %v237
    %v410 = vunpack.c.h.b16 %v237
    %v411 = vunpack.c.l.b16 %v238
    %v412 = vunpack.c.h.b16 %v238
    %v413 = vunpack.c.l.b16 %v239
    %v414 = vunpack.c.h.b16 %v239
    %v415 = vunpack.c.l.b16 %v240
    %v416 = vunpack.c.h.b16 %v240
    %v417 = vunpack.c.l.b16 %v241
    %v418 = vunpack.c.h.b16 %v241
    %v419 = vunpack.c.l.b16 %v242
    %v420 = vunpack.c.h.b16 %v242
    %v421 = vunpack.c.l.b16 %v243
    %v422 = vunpack.c.h.b16 %v243
    %v423 = vunpack.c.l.b16 %v244
    %v424 = vunpack.c.h.b16 %v244
    %v425 = vunpack.c.l.b16 %v245
    %v426 = vunpack.c.h.b16 %v245
    %v427 = vunpack.c.l.b16 %v246
    %v428 = vunpack.c.h.b16 %v246
    %v429 = vunpack.c.l.b16 %v247
    %v430 = vunpack.c.h.b16 %v247
    %v431 = vunpack.c.l.b16 %v248
    %v432 = vunpack.c.h.b16 %v248
    %v433 = vunpack.c.l.b16 %v249
    %v434 = vunpack.c.h.b16 %v249
    %v435 = vunpack.c.l.b16 %v250
    %v436 = vunpack.c.h.b16 %v250
    %v437 = vunpack.c.l.b16 %v251
    %v438 = vunpack.c.h.b16 %v251
    %v439 = vunpack.c.l.b16 %v252
    %v440 = vunpack.c.h.b16 %v252
    %v441 = vunpack.c.l.b16 %v253
    %v442 = vunpack.c.h.b16 %v253
    %v443 = vunpack.c.l.b16 %v254
    %v444 = vunpack.c.h.b16 %v254
    %v445 = vunpack.c.l.b16 %v255
    %v446 = vunpack.c.h.b16 %v255
    %v447 = vunpack.c.l.b16 %v256
    %v448 = vunpack.c.h.b16 %v256
    %v449 = vunpack.c.l.b16 %v257
    %v450 = vunpack.c.h.b16 %v257
    %v451 = vunpack.c.l.b16 %v258
    %v452 = vunpack.c.h.b16 %v258
    %v453 = vunpack.c.l.b16 %v259
    %v454 = vunpack.c.h.b16 %v259
    %v455 = vunpack.c.l.b16 %v260
    %v456 = vunpack.c.h.b16 %v260
    %v457 = vunpack.c.l.b16 %v261
    %v458 = vunpack.c.h.b16 %v261
    %v459 = vunpack.c.l.b16 %v262
    %v460 = vunpack.c.h.b16 %v262
    %v461 = vunpack.c.l.b16 %v263
    %v462 = vunpack.c.h.b16 %v263
    %v463 = vunpack.c.l.b16 %v264
    %v464 = vunpack.c.h.b16 %v264
    %v465 = vunpack.c.l.b16 %v265
    %v466 = vunpack.c.h.b16 %v265
    %v467 = vunpack.c.l.b16 %v266
    %v468 = vunpack.c.h.b16 %v266
    %v469 = vunpack.c.l.b16 %v267
    %v470 = vunpack.c.h.b16 %v267
    %v471 = vunpack.c.l.b16 %v268
    %v472 = vunpack.c.h.b16 %v268
    %v473 = vpack.c.b16 %v347, %v345
    %v474 = vpack.c.b16 %v348, %v346
    %v475 = vpack.c.b16 %v351, %v349
    %v476 = vpack.c.b16 %v352, %v350
    %v477 = vpack.c.b16 %v355, %v353
    %v478 = vpack.c.b16 %v356, %v354
    %v479 = vpack.c.b16 %v359, %v357
    %v480 = vpack.c.b16 %v360, %v358
    %v481 = vpack.c.b16 %v363, %v361
    %v482 = vpack.c.b16 %v364, %v362
    %v483 = vpack.c.b16 %v367, %v365
    %v484 = vpack.c.b16 %v368, %v366
    %v485 = vpack.c.b16 %v371, %v369
    %v486 = vpack.c.b16 %v372, %v370
    %v487 = vpack.c.b16 %v375, %v373
    %v488 = vpack.c.b16 %v376, %v374
    %v489 = vpack.c.b16 %v379, %v377
    %v490 = vpack.c.b16 %v380, %v378
    %v491 = vpack.c.b16 %v383, %v381
    %v492 = vpack.c.b16 %v384, %v382
    %v493 = vpack.c.b16 %v387, %v385
    %v494 = vpack.c.b16 %v388, %v386
    %v495 = vpack.c.b16 %v391, %v389
    %v496 = vpack.c.b16 %v392, %v390
    %v497 = vpack.c.b16 %v395, %v393
    %v498 = vpack.c.b16 %v396, %v394
    %v499 = vpack.c.b16 %v399, %v397
    %v500 = vpack.c.b16 %v400, %v398
    %v501 = vpack.c.b16 %v403, %v401
    %v502 = vpack.c.b16 %v404, %v402
    %v503 = vpack.c.b16 %v407, %v405
    %v504 = vpack.c.b16 %v408, %v406
    %v505 = vpack.c.b16 %v411, %v409
    %v506 = vpack.c.b16 %v412, %v410
    %v507 = vpack.c.b16 %v415, %v413
    %v508 = vpack.c.b16 %v416, %v414
    %v509 = vpack.c.b16 %v419, %v417
    %v510 = vpack.c.b16 %v420, %v418
    %v511 = vpack.c.b16 %v423, %v421
    %v512 = vpack.c.b16 %v424, %v422
    %v513 = vpack.c.b16 %v427, %v425
    %v514 = vpack.c.b16 %v428, %v426
    %v515 = vpack.c.b16 %v431, %v429
    %v516 = vpack.c.b16 %v432, %v430
    %v517 = vpack.c.b16 %v435, %v433
    %v518 = vpack.c.b16 %v436, %v434
    %v519 = vpack.c.b16 %v439, %v437
    %v520 = vpack.c.b16 %v440, %v438
    %v521 = vpack.c.b16 %v443, %v441
    %v522 = vpack.c.b16 %v444, %v442
    %v523 = vpack.c.b16 %v447, %v445
    %v524 = vpack.c.b16 %v448, %v446
    %v525 = vpack.c.b16 %v451, %v449
    %v526 = vpack.c.b16 %v452, %v450
    %v527 = vpack.c.b16 %v455, %v453
    %v528 = vpack.c.b16 %v456, %v454
    %v529 = vpack.c.b16 %v459, %v457
    %v530 = vpack.c.b16 %v460, %v458
    %v531 = vpack.c.b16 %v463, %v461
    %v532 = vpack.c.b16 %v464, %v462
    %v533 = vpack.c.b16 %v467, %v465
    %v534 = vpack.c.b16 %v468, %v466
    %v535 = vpack.c.b16 %v471, %v469
    %v536 = vpack.c.b16 %v472, %v470
    %601 = vmatprep.subr.bf16.mxu0 %v488
    %602 = vmatpush1.bf16.msra.mxu0 %v487
    %603 = vmatprep.subr.bf16.mxu0 %v486
    %604 = vmatpush1.bf16.msra.mxu0 %v485
    %605 = vmatprep.subr.bf16.mxu0 %v484
    %606 = vmatpush1.bf16.msra.mxu0 %v483
    %607 = vmatprep.subr.bf16.mxu0 %v482
    %608 = vmatpush1.bf16.msra.mxu0 %v481
    %609 = vmatprep.subr.bf16.mxu0 %v480
    %610 = vmatpush1.bf16.msra.mxu0 %v479
    %611 = vmatprep.subr.bf16.mxu0 %v478
    %612 = vmatpush1.bf16.msra.mxu0 %v477
    %613 = vmatprep.subr.bf16.mxu0 %v476
    %614 = vmatpush1.bf16.msra.mxu0 %v475
    %615 = vmatprep.subr.bf16.mxu0 %v474
    %616 = vmatpush1.bf16.msra.mxu0 %v473
    %617 = vmatprep.subr.bf16.mxu0 %v504
    %618 = vmatpush2.bf16.msra.mxu0 %v503
    %619 = vmatprep.subr.bf16.mxu0 %v502
    %620 = vmatpush2.bf16.msra.mxu0 %v501
    %621 = vmatprep.subr.bf16.mxu0 %v500
    %622 = vmatpush2.bf16.msra.mxu0 %v499
    %623 = vmatprep.subr.bf16.mxu0 %v498
    %624 = vmatpush2.bf16.msra.mxu0 %v497
    %625 = vmatprep.subr.bf16.mxu0 %v496
    %626 = vmatpush2.bf16.msra.mxu0 %v495
    %627 = vmatprep.subr.bf16.mxu0 %v494
    %628 = vmatpush2.bf16.msra.mxu0 %v493
    %629 = vmatprep.subr.bf16.mxu0 %v492
    %630 = vmatpush2.bf16.msra.mxu0 %v491
    %631 = vmatprep.subr.bf16.mxu0 %v490
    %632 = vmatpush2.bf16.msra.mxu0 %v489
    %633 = vmatprep.mubr.bf16.mxu0 %v202
    %634 = vmatmul.mubr.bf16.gmra.mxu0 %v201
    %v635 = vpop.f32.mrf.mxu0
    %v636 = vadd.f32 %v274, %v635
    %v637 = vpop.f32.mrf.mxu0
    %v638 = vadd.f32 %v278, %v637
    %v639 = vpop.f32.mrf.mxu0
    %v640 = vpop.f32.mrf.mxu0
    %641 = vdwg.mxu0
    %642 = vmatprep.subr.bf16.mxu0 %v520
    %643 = vmatpush1.bf16.msra.mxu0 %v519
    %644 = vmatprep.subr.bf16.mxu0 %v518
    %645 = vmatpush1.bf16.msra.mxu0 %v517
    %646 = vmatprep.subr.bf16.mxu0 %v516
    %647 = vmatpush1.bf16.msra.mxu0 %v515
    %648 = vmatprep.subr.bf16.mxu0 %v514
    %649 = vmatpush1.bf16.msra.mxu0 %v513
    %650 = vmatprep.subr.bf16.mxu0 %v512
    %651 = vmatpush1.bf16.msra.mxu0 %v511
    %652 = vmatprep.subr.bf16.mxu0 %v510
    %653 = vmatpush1.bf16.msra.mxu0 %v509
    %654 = vmatprep.subr.bf16.mxu0 %v508
    %655 = vmatpush1.bf16.msra.mxu0 %v507
    %656 = vmatprep.subr.bf16.mxu0 %v506
    %657 = vmatpush1.bf16.msra.mxu0 %v505
    %658 = vmatprep.subr.bf16.mxu0 %v536
    %659 = vmatpush2.bf16.msra.mxu0 %v535
    %660 = vmatprep.subr.bf16.mxu0 %v534
    %661 = vmatpush2.bf16.msra.mxu0 %v533
    %662 = vmatprep.subr.bf16.mxu0 %v532
    %663 = vmatpush2.bf16.msra.mxu0 %v531
    %664 = vmatprep.subr.bf16.mxu0 %v530
    %665 = vmatpush2.bf16.msra.mxu0 %v529
    %666 = vmatprep.subr.bf16.mxu0 %v528
    %667 = vmatpush2.bf16.msra.mxu0 %v527
    %668 = vmatprep.subr.bf16.mxu0 %v526
    %669 = vmatpush2.bf16.msra.mxu0 %v525
    %670 = vmatprep.subr.bf16.mxu0 %v524
    %671 = vmatpush2.bf16.msra.mxu0 %v523
    %672 = vmatprep.subr.bf16.mxu0 %v522
    %673 = vmatpush2.bf16.msra.mxu0 %v521
    %674 = vmatprep.mubr.bf16.mxu0 %v204
    %675 = vmatmul.mubr.bf16.gmra.mxu0 %v203
    %v676 = vpop.f32.mrf.mxu0
    %v677 = vadd.f32 %v636, %v676
    %v678 = vpop.f32.mrf.mxu0
    %v679 = vadd.f32 %v638, %v678
    %v680 = vpop.f32.mrf.mxu0
    %v681 = vpop.f32.mrf.mxu0
    %682 = vdwg.mxu0
    %v683 = vmax.f32 %v677, 0.0
    %v684 = vmax.f32 %v679, 0.0
    %v685 = vpack.c.bf16 %v683, %v683
    %v686 = vpack.c.bf16 %v684, %v684
    %v687 = vld [vmem:[#allocation7] sm:$0xff]
    %v688 = vld [vmem:[#allocation7 + $0x8] sm:$0xff]
    %v689 = vld [vmem:[#allocation7 + $0x10] sm:$0xff]
    %v690 = vld [vmem:[#allocation7 + $0x18] sm:$0xff]
    %v691 = vld [vmem:[#allocation7 + $0x20] sm:$0xff]
    %v692 = vld [vmem:[#allocation7 + $0x28] sm:$0xff]
    %v693 = vld [vmem:[#allocation7 + $0x30] sm:$0xff]
    %v694 = vld [vmem:[#allocation7 + $0x38] sm:$0xff]
    %v695 = vld [vmem:[#allocation7 + $0x40] sm:$0xff]
    %v696 = vld [vmem:[#allocation7 + $0x48] sm:$0xff]
    %v697 = vld [vmem:[#allocation7 + $0x50] sm:$0xff]
    %v698 = vld [vmem:[#allocation7 + $0x58] sm:$0xff]
    %v699 = vld [vmem:[#allocation7 + $0x60] sm:$0xff]
    %v700 = vld [vmem:[#allocation7 + $0x68] sm:$0xff]
    %v701 = vld [vmem:[#allocation7 + $0x70] sm:$0xff]
    %v702 = vld [vmem:[#allocation7 + $0x78] sm:$0xff]
    %v703 = vld [vmem:[#allocation7 + $0x80] sm:$0xff]
    %v704 = vld [vmem:[#allocation7 + $0x88] sm:$0xff]
    %v705 = vld [vmem:[#allocation7 + $0x90] sm:$0xff]
    %v706 = vld [vmem:[#allocation7 + $0x98] sm:$0xff]
    %v707 = vld [vmem:[#allocation7 + $0xa0] sm:$0xff]
    %v708 = vld [vmem:[#allocation7 + $0xa8] sm:$0xff]
    %v709 = vld [vmem:[#allocation7 + $0xb0] sm:$0xff]
    %v710 = vld [vmem:[#allocation7 + $0xb8] sm:$0xff]
    %v711 = vld [vmem:[#allocation7 + $0xc0] sm:$0xff]
    %v712 = vld [vmem:[#allocation7 + $0xc8] sm:$0xff]
    %v713 = vld [vmem:[#allocation7 + $0xd0] sm:$0xff]
    %v714 = vld [vmem:[#allocation7 + $0xd8] sm:$0xff]
    %v715 = vld [vmem:[#allocation7 + $0xe0] sm:$0xff]
    %v716 = vld [vmem:[#allocation7 + $0xe8] sm:$0xff]
    %v717 = vld [vmem:[#allocation7 + $0xf0] sm:$0xff]
    %v718 = vld [vmem:[#allocation7 + $0xf8] sm:$0xff]
    %v719 = vld [vmem:[%s6] sm:$0x3]
    %v721 = vlaneseq
    %v722 = vshrl.u32 %v721, 7
    %v723 = vsub.s32 0, %v722
    %v724 = vrot.slane %v719, %v723
    %v725 = vlaneseq
    %v726 = vshrl.u32 %v725, 7
    %v727 = vsub.s32 1, %v726
    %v728 = vrot.slane %v719, %v727
    %v763 = vunpack.c.l.b16 %v687
    %v764 = vunpack.c.h.b16 %v687
    %v765 = vunpack.c.l.b16 %v688
    %v766 = vunpack.c.h.b16 %v688
    %v767 = vunpack.c.l.b16 %v689
    %v768 = vunpack.c.h.b16 %v689
    %v769 = vunpack.c.l.b16 %v690
    %v770 = vunpack.c.h.b16 %v690
    %v771 = vunpack.c.l.b16 %v691
    %v772 = vunpack.c.h.b16 %v691
    %v773 = vunpack.c.l.b16 %v692
    %v774 = vunpack.c.h.b16 %v692
    %v775 = vunpack.c.l.b16 %v693
    %v776 = vunpack.c.h.b16 %v693
    %v777 = vunpack.c.l.b16 %v694
    %v778 = vunpack.c.h.b16 %v694
    %v779 = vunpack.c.l.b16 %v695
    %v780 = vunpack.c.h.b16 %v695
    %v781 = vunpack.c.l.b16 %v696
    %v782 = vunpack.c.h.b16 %v696
    %v783 = vunpack.c.l.b16 %v697
    %v784 = vunpack.c.h.b16 %v697
    %v785 = vunpack.c.l.b16 %v698
    %v786 = vunpack.c.h.b16 %v698
    %v787 = vunpack.c.l.b16 %v699
    %v788 = vunpack.c.h.b16 %v699
    %v789 = vunpack.c.l.b16 %v700
    %v790 = vunpack.c.h.b16 %v700
    %v791 = vunpack.c.l.b16 %v701
    %v792 = vunpack.c.h.b16 %v701
    %v793 = vunpack.c.l.b16 %v702
    %v794 = vunpack.c.h.b16 %v702
    %v795 = vunpack.c.l.b16 %v703
    %v796 = vunpack.c.h.b16 %v703
    %v797 = vunpack.c.l.b16 %v704
    %v798 = vunpack.c.h.b16 %v704
    %v799 = vunpack.c.l.b16 %v705
    %v800 = vunpack.c.h.b16 %v705
    %v801 = vunpack.c.l.b16 %v706
    %v802 = vunpack.c.h.b16 %v706
    %v803 = vunpack.c.l.b16 %v707
    %v804 = vunpack.c.h.b16 %v707
    %v805 = vunpack.c.l.b16 %v708
    %v806 = vunpack.c.h.b16 %v708
    %v807 = vunpack.c.l.b16 %v709
    %v808 = vunpack.c.h.b16 %v709
    %v809 = vunpack.c.l.b16 %v710
    %v810 = vunpack.c.h.b16 %v710
    %v811 = vunpack.c.l.b16 %v711
    %v812 = vunpack.c.h.b16 %v711
    %v813 = vunpack.c.l.b16 %v712
    %v814 = vunpack.c.h.b16 %v712
    %v815 = vunpack.c.l.b16 %v713
    %v816 = vunpack.c.h.b16 %v713
    %v817 = vunpack.c.l.b16 %v714
    %v818 = vunpack.c.h.b16 %v714
    %v819 = vunpack.c.l.b16 %v715
    %v820 = vunpack.c.h.b16 %v715
    %v821 = vunpack.c.l.b16 %v716
    %v822 = vunpack.c.h.b16 %v716
    %v823 = vunpack.c.l.b16 %v717
    %v824 = vunpack.c.h.b16 %v717
    %v825 = vunpack.c.l.b16 %v718
    %v826 = vunpack.c.h.b16 %v718
    %v827 = vpack.c.b16 %v765, %v763
    %v828 = vpack.c.b16 %v766, %v764
    %v829 = vpack.c.b16 %v769, %v767
    %v830 = vpack.c.b16 %v770, %v768
    %v831 = vpack.c.b16 %v773, %v771
    %v832 = vpack.c.b16 %v774, %v772
    %v833 = vpack.c.b16 %v777, %v775
    %v834 = vpack.c.b16 %v778, %v776
    %v835 = vpack.c.b16 %v781, %v779
    %v836 = vpack.c.b16 %v782, %v780
    %v837 = vpack.c.b16 %v785, %v783
    %v838 = vpack.c.b16 %v786, %v784
    %v839 = vpack.c.b16 %v789, %v787
    %v840 = vpack.c.b16 %v790, %v788
    %v841 = vpack.c.b16 %v793, %v791
    %v842 = vpack.c.b16 %v794, %v792
    %v843 = vpack.c.b16 %v797, %v795
    %v844 = vpack.c.b16 %v798, %v796
    %v845 = vpack.c.b16 %v801, %v799
    %v846 = vpack.c.b16 %v802, %v800
    %v847 = vpack.c.b16 %v805, %v803
    %v848 = vpack.c.b16 %v806, %v804
    %v849 = vpack.c.b16 %v809, %v807
    %v850 = vpack.c.b16 %v810, %v808
    %v851 = vpack.c.b16 %v813, %v811
    %v852 = vpack.c.b16 %v814, %v812
    %v853 = vpack.c.b16 %v817, %v815
    %v854 = vpack.c.b16 %v818, %v816
    %v855 = vpack.c.b16 %v821, %v819
    %v856 = vpack.c.b16 %v822, %v820
    %v857 = vpack.c.b16 %v825, %v823
    %v858 = vpack.c.b16 %v826, %v824
    %891 = vmatprep.subr.bf16.mxu0 %v842
    %892 = vmatpush1.bf16.msra.mxu0 %v841
    %893 = vmatprep.subr.bf16.mxu0 %v840
    %894 = vmatpush1.bf16.msra.mxu0 %v839
    %895 = vmatprep.subr.bf16.mxu0 %v838
    %896 = vmatpush1.bf16.msra.mxu0 %v837
    %897 = vmatprep.subr.bf16.mxu0 %v836
    %898 = vmatpush1.bf16.msra.mxu0 %v835
    %899 = vmatprep.subr.bf16.mxu0 %v834
    %900 = vmatpush1.bf16.msra.mxu0 %v833
    %901 = vmatprep.subr.bf16.mxu0 %v832
    %902 = vmatpush1.bf16.msra.mxu0 %v831
    %903 = vmatprep.subr.bf16.mxu0 %v830
    %904 = vmatpush1.bf16.msra.mxu0 %v829
    %905 = vmatprep.subr.bf16.mxu0 %v828
    %906 = vmatpush1.bf16.msra.mxu0 %v827
    %907 = vmatprep.subr.bf16.mxu0 %v858
    %908 = vmatpush2.bf16.msra.mxu0 %v857
    %909 = vmatprep.subr.bf16.mxu0 %v856
    %910 = vmatpush2.bf16.msra.mxu0 %v855
    %911 = vmatprep.subr.bf16.mxu0 %v854
    %912 = vmatpush2.bf16.msra.mxu0 %v853
    %913 = vmatprep.subr.bf16.mxu0 %v852
    %914 = vmatpush2.bf16.msra.mxu0 %v851
    %915 = vmatprep.subr.bf16.mxu0 %v850
    %916 = vmatpush2.bf16.msra.mxu0 %v849
    %917 = vmatprep.subr.bf16.mxu0 %v848
    %918 = vmatpush2.bf16.msra.mxu0 %v847
    %919 = vmatprep.subr.bf16.mxu0 %v846
    %920 = vmatpush2.bf16.msra.mxu0 %v845
    %921 = vmatprep.subr.bf16.mxu0 %v844
    %922 = vmatpush2.bf16.msra.mxu0 %v843
    %923 = vmatprep.mubr.bf16.mxu0 %v686
    %924 = vmatmul.mubr.bf16.gmra.mxu0 %v685
    %v925 = vpop.f32.mrf.mxu0
    %v926 = vadd.f32 %v724, %v925
    %v927 = vpop.f32.mrf.mxu0
    %v928 = vadd.f32 %v728, %v927
    %v929 = vpop.f32.mrf.mxu0
    %v930 = vpop.f32.mrf.mxu0
    %931 = vdwg.mxu0
    %v932 = vmax.f32 %v926, 0.0
    %v933 = vmax.f32 %v928, 0.0
    %v934 = vpack.c.bf16 %v932, %v932
    %v935 = vpack.c.bf16 %v933, %v933
    %v936 = vld [vmem:[%s7] sm:$0xf]
    %v937 = vld [vmem:[%s7 + $0x4] sm:$0xf]
    %v938 = vld [vmem:[%s7 + $0x8] sm:$0xf]
    %v939 = vld [vmem:[%s7 + $0xc] sm:$0xf]
    %v940 = vld [vmem:[%s7 + $0x10] sm:$0xf]
    %v941 = vld [vmem:[%s7 + $0x14] sm:$0xf]
    %v942 = vld [vmem:[%s7 + $0x18] sm:$0xf]
    %v943 = vld [vmem:[%s7 + $0x1c] sm:$0xf]
    %v944 = vld [vmem:[%s7 + $0x20] sm:$0xf]
    %v945 = vld [vmem:[%s7 + $0x24] sm:$0xf]
    %v946 = vld [vmem:[%s7 + $0x28] sm:$0xf]
    %v947 = vld [vmem:[%s7 + $0x2c] sm:$0xf]
    %v948 = vld [vmem:[%s7 + $0x30] sm:$0xf]
    %v949 = vld [vmem:[%s7 + $0x34] sm:$0xf]
    %v950 = vld [vmem:[%s7 + $0x38] sm:$0xf]
    %v951 = vld [vmem:[%s7 + $0x3c] sm:$0xf]
    %v952 = vld [vmem:[%s7 + $0x40] sm:$0xf]
    %v953 = vld [vmem:[%s7 + $0x44] sm:$0xf]
    %v954 = vld [vmem:[%s7 + $0x48] sm:$0xf]
    %v955 = vld [vmem:[%s7 + $0x4c] sm:$0xf]
    %v956 = vld [vmem:[%s7 + $0x50] sm:$0xf]
    %v957 = vld [vmem:[%s7 + $0x54] sm:$0xf]
    %v958 = vld [vmem:[%s7 + $0x58] sm:$0xf]
    %v959 = vld [vmem:[%s7 + $0x5c] sm:$0xf]
    %v960 = vld [vmem:[%s7 + $0x60] sm:$0xf]
    %v961 = vld [vmem:[%s7 + $0x64] sm:$0xf]
    %v962 = vld [vmem:[%s7 + $0x68] sm:$0xf]
    %v963 = vld [vmem:[%s7 + $0x6c] sm:$0xf]
    %v964 = vld [vmem:[%s7 + $0x70] sm:$0xf]
    %v965 = vld [vmem:[%s7 + $0x74] sm:$0xf]
    %v966 = vld [vmem:[%s7 + $0x78] sm:$0xf]
    %v967 = vld [vmem:[%s7 + $0x7c] sm:$0xf]
    %v968 = vld [vmem:[%s8] sm:$0x1]
    %v970 = vlaneseq
    %v971 = vshrl.u32 %v970, 7
    %v972 = vsub.s32 0, %v971
    %v973 = vrot.slane %v968, %v972
    %v1007 = vunpack.c.l.b16 %v936
    %v1008 = vunpack.c.l.b16 %v937
    %v1009 = vunpack.c.l.b16 %v938
    %v1010 = vunpack.c.l.b16 %v939
    %v1011 = vunpack.c.l.b16 %v940
    %v1012 = vunpack.c.l.b16 %v941
    %v1013 = vunpack.c.l.b16 %v942
    %v1014 = vunpack.c.l.b16 %v943
    %v1015 = vunpack.c.l.b16 %v944
    %v1016 = vunpack.c.l.b16 %v945
    %v1017 = vunpack.c.l.b16 %v946
    %v1018 = vunpack.c.l.b16 %v947
    %v1019 = vunpack.c.l.b16 %v948
    %v1020 = vunpack.c.l.b16 %v949
    %v1021 = vunpack.c.l.b16 %v950
    %v1022 = vunpack.c.l.b16 %v951
    %v1023 = vunpack.c.l.b16 %v952
    %v1024 = vunpack.c.l.b16 %v953
    %v1025 = vunpack.c.l.b16 %v954
    %v1026 = vunpack.c.l.b16 %v955
    %v1027 = vunpack.c.l.b16 %v956
    %v1028 = vunpack.c.l.b16 %v957
    %v1029 = vunpack.c.l.b16 %v958
    %v1030 = vunpack.c.l.b16 %v959
    %v1031 = vunpack.c.l.b16 %v960
    %v1032 = vunpack.c.l.b16 %v961
    %v1033 = vunpack.c.l.b16 %v962
    %v1034 = vunpack.c.l.b16 %v963
    %v1035 = vunpack.c.l.b16 %v964
    %v1036 = vunpack.c.l.b16 %v965
    %v1037 = vunpack.c.l.b16 %v966
    %v1038 = vunpack.c.l.b16 %v967
    %v1039 = vpack.c.b16 %v1008, %v1007
    %v1040 = vpack.c.b16 %v1010, %v1009
    %v1041 = vpack.c.b16 %v1012, %v1011
    %v1042 = vpack.c.b16 %v1014, %v1013
    %v1043 = vpack.c.b16 %v1016, %v1015
    %v1044 = vpack.c.b16 %v1018, %v1017
    %v1045 = vpack.c.b16 %v1020, %v1019
    %v1046 = vpack.c.b16 %v1022, %v1021
    %v1047 = vpack.c.b16 %v1024, %v1023
    %v1048 = vpack.c.b16 %v1026, %v1025
    %v1049 = vpack.c.b16 %v1028, %v1027
    %v1050 = vpack.c.b16 %v1030, %v1029
    %v1051 = vpack.c.b16 %v1032, %v1031
    %v1052 = vpack.c.b16 %v1034, %v1033
    %v1053 = vpack.c.b16 %v1036, %v1035
    %v1054 = vpack.c.b16 %v1038, %v1037
    %1071 = vmatprep.subr.bf16.mxu0 0
    %1072 = vmatpush1.bf16.msra.mxu0 %v1046
    %1073 = vmatprep.subr.bf16.mxu0 0
    %1074 = vmatpush1.bf16.msra.mxu0 %v1045
    %1075 = vmatprep.subr.bf16.mxu0 0
    %1076 = vmatpush1.bf16.msra.mxu0 %v1044
    %1077 = vmatprep.subr.bf16.mxu0 0
    %1078 = vmatpush1.bf16.msra.mxu0 %v1043
    %1079 = vmatprep.subr.bf16.mxu0 0
    %1080 = vmatpush1.bf16.msra.mxu0 %v1042
    %1081 = vmatprep.subr.bf16.mxu0 0
    %1082 = vmatpush1.bf16.msra.mxu0 %v1041
    %1083 = vmatprep.subr.bf16.mxu0 0
    %1084 = vmatpush1.bf16.msra.mxu0 %v1040
    %1085 = vmatprep.subr.bf16.mxu0 0
    %1086 = vmatpush1.bf16.msra.mxu0 %v1039
    %1087 = vmatprep.subr.bf16.mxu0 0
    %1088 = vmatpush2.bf16.msra.mxu0 %v1054
    %1089 = vmatprep.subr.bf16.mxu0 0
    %1090 = vmatpush2.bf16.msra.mxu0 %v1053
    %1091 = vmatprep.subr.bf16.mxu0 0
    %1092 = vmatpush2.bf16.msra.mxu0 %v1052
    %1093 = vmatprep.subr.bf16.mxu0 0
    %1094 = vmatpush2.bf16.msra.mxu0 %v1051
    %1095 = vmatprep.subr.bf16.mxu0 0
    %1096 = vmatpush2.bf16.msra.mxu0 %v1050
    %1097 = vmatprep.subr.bf16.mxu0 0
    %1098 = vmatpush2.bf16.msra.mxu0 %v1049
    %1099 = vmatprep.subr.bf16.mxu0 0
    %1100 = vmatpush2.bf16.msra.mxu0 %v1048
    %1101 = vmatprep.subr.bf16.mxu0 0
    %1102 = vmatpush2.bf16.msra.mxu0 %v1047
    %1103 = vmatprep.mubr.bf16.mxu0 %v935
    %1104 = vmatmul.mubr.bf16.gmra.mxu0 %v934
    %v1105 = vpop.f32.mrf.mxu0
    %v1106 = vadd.f32 %v973, %v1105
    %v1107 = vpop.f32.mrf.mxu0
    %v1108 = vpop.f32.mrf.mxu0
    %v1109 = vpop.f32.mrf.mxu0
    %1110 = vdwg.mxu0
    %1111 = vst [vmem:[#allocation8] sm:$0x3] %v1106
    // Predicated region
    $region50: #{nine_net_forward.1} parent=1 // pred_check
      _
    $region51: #{nine_net_forward.1} parent=1 // pred_check_branch
      %1113 = sbr.rel (0) target = $region53
    $region52: #{nine_net_forward.1} parent=1 // pred_region
      %s1115 = ssub.s32 32, 32
      %1116 = vsyncadd [#allocation4], %s1115
      %s1118 = sshll.u32 [#allocation8], 4
      %s1119 = int_to_ptr.vmem [resolvable:$true] %s1118
      %1121 = dma.vmem_to_hbm [thread:$0]  %s1119, 32, %s9, [#allocation4]
    $region53: #{nine_net_forward.1} parent=1 // pred_fallthru
      _
    // Predicated region
    $region54: #{nine_net_forward.1} parent=1 // pred_check
      _
    $region55: #{nine_net_forward.1} parent=1 // pred_check_branch
      %1123 = sbr.rel (0) target = $region57
    $region56: #{nine_net_forward.1} parent=1 // pred_region
      %1124 = dma.done [#allocation4], 32
    $region57: #{nine_net_forward.1} parent=1 // pred_fallthru
      _
    %1125 = vsyncpa [#allocation3], 1
    %1126 = vsyncpa [#allocation6], 1
    %1127 = vsyncpa [#allocation4], 1

</llo_original>
